<compile_context>
chip_gen: v6e
topology: v6e:2x2x1
jax: 0.10.0
libtpu: 0.0.40
codegen_flags: <defaults>
</compile_context>

<pallas_src>
import functools

import jax
import jax.numpy as jnp
from jax.experimental import pallas as pl
from jax.experimental.pallas import tpu as pltpu

_MAX_TILE_ROWS = 1024  # past ~512 rows the per-step overhead is already <1%


def _rmsnorm_kernel(x_ref, w_ref, o_ref, *, eps):
    # x_ref: (TR, D) tile of rows, w_ref: (1, D) resident weight, o_ref: (TR, D)
    x = x_ref[...].astype(jnp.float32)
    w = w_ref[...].astype(jnp.float32)             # (1, D), broadcasts over rows
    ms = jnp.mean(x * x, axis=-1, keepdims=True)   # (TR, 1)
    norm = jnp.sqrt(ms)                            # (TR, 1)
    # Exact reciprocal on the narrow (TR, 1) denominator: only TR/8 vregs of
    # divide work, completely hidden under the HBM DMA, so approx=True would
    # only add error, not speed. Remaining per-element work: two vmuls.
    inv = 1.0 / (norm + eps)                       # (TR, 1)
    o_ref[...] = (x * inv * w).astype(o_ref.dtype)


def _vmem_budgets():
    """Return (tile_budget_bytes, vmem_limit_bytes), generation-aware.

    v5e/v6e: 128 MiB physical VMEM -> ~96 MiB scoped limit, ~72 MiB of tiles.
    v7x:      64 MiB physical VMEM -> ~48 MiB scoped limit, ~36 MiB of tiles.
    Falls back to the conservative (v7x-safe) numbers if the query fails.
    """
    vmem_bytes = None
    try:
        info = pltpu.get_tpu_info()
        vmem_bytes = getattr(info, "vmem_capacity_bytes", None)
    except Exception:
        vmem_bytes = None
    if not vmem_bytes:
        vmem_bytes = 64 * 1024 * 1024  # conservative: fits every generation
    # Leave headroom for Mosaic internal scratch; never exceed 96 MiB scoped.
    limit = min(max(vmem_bytes - 16 * 1024 * 1024, 32 * 1024 * 1024),
                96 * 1024 * 1024)
    # Input + output tiles, each double-buffered, get ~3/4 of the scoped limit.
    budget = (limit * 3) // 4
    return budget, limit


def _choose_tile_rows(rows, dim, itemsize, tile_budget, tile_rows=None):
    """Pick the row-tile size.

    - dtype-aware sublane multiple (8 for f32, 16 for bf16, 32 for int8/fp8)
    - VMEM-budgeted: 4 * TR * D * itemsize <= budget (in + out, double-buffered)
    - prefers an exact divisor of `rows` only if it stays large (no tiny-tile
      cliff); otherwise the partial final block is simply masked by Pallas.
    - when rows is large, keeps >= 2 grid steps so v7x's 2 TCs both get work.
    """
    sublane = max(8, 32 // itemsize)
    if tile_rows is not None:
        return max(sublane, (tile_rows // sublane) * sublane)
    if rows <= sublane:
        return rows  # full-extent block: always a legal BlockSpec

    cap = tile_budget // (4 * dim * itemsize)
    cap = max(sublane, min(cap, _MAX_TILE_ROWS, rows))
    cap = (cap // sublane) * sublane

    # v7x megacore: when there is real work and it would fit in one tile,
    # split it so the "parallel" row axis can shard across both TensorCores.
    if rows >= 1024 and cap >= rows:
        half = (((rows + 1) // 2 + sublane - 1) // sublane) * sublane
        cap = max(sublane, min(cap, half))

    # Exact divisor only if it is still big enough to stay near the HBM
    # roofline; otherwise keep `cap` and let Pallas mask the tail block.
    min_ok = min(cap, max(256, cap // 2))
    if rows % sublane == 0:
        for tr in range(cap, min_ok - 1, -sublane):
            if rows % tr == 0:
                return tr
    return cap


def rmsnorm(x, weight, eps=1e-6, *, tile_rows=None):
    """RMSNorm over the last axis of x. x: (..., dim), weight: (dim,).

    For best performance `dim` should be a multiple of 128 (lane-dense stores);
    other dims are correct but pay masked partial-store overhead.
    """
    orig_shape = x.shape
    dim = orig_shape[-1]
    assert weight.shape == (dim,)

    x2d = x.reshape(-1, dim)
    rows = x2d.shape[0]
    itemsize = jnp.dtype(x.dtype).itemsize

    tile_budget, vmem_limit = _vmem_budgets()
    tr = _choose_tile_rows(rows, dim, itemsize, tile_budget, tile_rows)
    grid = (pl.cdiv(rows, tr),)  # partial final block handled by masking

    w2d = weight.reshape(1, dim)

    cost = pl.CostEstimate(
        flops=3 * rows * dim,                 # square, two muls per element
        transcendentals=2 * rows,             # sqrt + reciprocal per row
        bytes_accessed=2 * rows * dim * itemsize + dim * itemsize,
    )

    out = pl.pallas_call(
        functools.partial(_rmsnorm_kernel, eps=eps),
        out_shape=jax.ShapeDtypeStruct((rows, dim), x.dtype),
        grid_spec=pltpu.PrefetchScalarGridSpec(
            num_scalar_prefetch=0,
            grid=grid,
            in_specs=[
                pl.BlockSpec((tr, dim), lambda i: (i, 0)),
                # Constant index_map -> the weight block stays resident in
                # VMEM; it is not re-DMA'd every grid step.
                pl.BlockSpec((1, dim), lambda i: (0, 0)),
            ],
            out_specs=pl.BlockSpec((tr, dim), lambda i: (i, 0)),
        ),
        compiler_params=pltpu.CompilerParams(
            dimension_semantics=("parallel",),
            vmem_limit_bytes=vmem_limit,
        ),
        cost_estimate=cost,
    )(x2d, w2d)

    return out.reshape(orig_shape)


def rmsnorm_reference(x, weight, eps=1e-6):
    xf = x.astype(jnp.float32)
    norm = jnp.sqrt(jnp.mean(xf * xf, axis=-1, keepdims=True))
    return ((xf / (norm + eps)) * weight.astype(jnp.float32)).astype(x.dtype)


if __name__ == "__main__":
    key = jax.random.PRNGKey(0)
    # dim chosen as a multiple of 128 so stores are lane-dense (typical model dims).
    batch, seq, dim = 2, 8, 128

    x = jax.random.normal(key, (batch, seq, dim), dtype=jnp.float32)
    # nn.Parameter(torch.ones(dim)) -> deterministic ones init
    weight = jnp.ones((dim,), dtype=jnp.float32)

    out = jax.block_until_ready(rmsnorm(x, weight, eps=1e-6))
    ref = rmsnorm_reference(x, weight, eps=1e-6)
    assert out.shape == x.shape
    assert jnp.allclose(out, ref, atol=1e-5, rtol=1e-5), "mismatch vs reference"

    # Second check: row count that is NOT a multiple of the tile -> exercises
    # the masked partial final block (no pad/slice round-trip through HBM).
    x2 = jax.random.normal(jax.random.PRNGKey(1), (3, 7, dim), dtype=jnp.float32)
    out2 = jax.block_until_ready(rmsnorm(x2, weight, eps=1e-6))
    ref2 = rmsnorm_reference(x2, weight, eps=1e-6)
    assert out2.shape == x2.shape
    assert jnp.allclose(out2, ref2, atol=1e-5, rtol=1e-5), "mismatch (ragged rows)"

    print("KERNEL_OK")
</pallas_src>

<mosaic_0001>
module attributes {stable_mosaic.version = 11 : i64} {
  func.func @_rmsnorm_kernel(%arg0: i32, %arg1: memref<16x128xf32, #tpu.memory_space<vmem>>, %arg2: memref<1x128xf32, #tpu.memory_space<vmem>>, %arg3: memref<16x128xf32, #tpu.memory_space<vmem>>) attributes {dimension_semantics = [#tpu.dimension_semantics<parallel>], iteration_bounds = array<i64: 1>, scalar_prefetch = 0 : i64, scratch_operands = 0 : i64, tpu.core_type = #tpu.core_type<tc>, window_params = [{transform_indices = @transform_0, window_bounds = array<i64: 16, 128>}, {pipeline_mode = #tpu.pipeline_mode<synchronous>, transform_indices = @transform_1, window_bounds = array<i64: 1, 128>}, {transform_indices = @transform_2, window_bounds = array<i64: 16, 128>}]} {
    %c0 = arith.constant 0 : index
    %c0_0 = arith.constant 0 : index
    %0 = vector.load %arg1[%c0, %c0_0] : memref<16x128xf32, #tpu.memory_space<vmem>>, vector<16x128xf32>
    %c0_1 = arith.constant 0 : index
    %c0_2 = arith.constant 0 : index
    %1 = vector.load %arg2[%c0_1, %c0_2] : memref<1x128xf32, #tpu.memory_space<vmem>>, vector<1x128xf32>
    %2 = arith.mulf %0, %0 : vector<16x128xf32>
    %cst = arith.constant dense<0.000000e+00> : vector<16xf32>
    %3 = vector.multi_reduction <add>, %2, %cst [1] : vector<16x128xf32> to vector<16xf32>
    %4 = vector.shape_cast %3 : vector<16xf32> to vector<16x1xf32>
    %cst_3 = arith.constant 1.280000e+02 : f32
    %5 = vector.broadcast %cst_3 : f32 to vector<16x1xf32>
    %6 = arith.divf %4, %5 : vector<16x1xf32>
    %7 = math.sqrt %6 : vector<16x1xf32>
    %cst_4 = arith.constant 9.99999997E-7 : f32
    %8 = vector.broadcast %cst_4 : f32 to vector<16x1xf32>
    %9 = arith.addf %7, %8 : vector<16x1xf32>
    %cst_5 = arith.constant 1.000000e+00 : f32
    %10 = vector.broadcast %cst_5 : f32 to vector<16x1xf32>
    %11 = arith.divf %10, %9 : vector<16x1xf32>
    %12 = vector.broadcast %11 : vector<16x1xf32> to vector<16x128xf32>
    %13 = arith.mulf %0, %12 : vector<16x128xf32>
    %14 = vector.broadcast %1 : vector<1x128xf32> to vector<16x128xf32>
    %15 = arith.mulf %13, %14 : vector<16x128xf32>
    %c0_6 = arith.constant 0 : index
    %c0_7 = arith.constant 0 : index
    %16 = vector.load %arg3[%c0_6, %c0_7] : memref<16x128xf32, #tpu.memory_space<vmem>>, vector<16x128xf32>
    tpu.vector_store %arg3[%c0_6, %c0_7], %15 {strides = array<i32>} : memref<16x128xf32, #tpu.memory_space<vmem>>, vector<16x128xf32>,
    return
  }
  func.func @transform_0(%arg0: i32) -> (i32, i32) {
    %c0_i32 = arith.constant 0 : i32
    %c0_i32_0 = arith.constant 0 : i32
    return %arg0, %c0_i32 : i32, i32
  }
  func.func @transform_1(%arg0: i32) -> (i32, i32) {
    %c0_i32 = arith.constant 0 : i32
    %c0_i32_0 = arith.constant 0 : i32
    %c0_i32_1 = arith.constant 0 : i32
    return %c0_i32, %c0_i32_0 : i32, i32
  }
  func.func @transform_2(%arg0: i32) -> (i32, i32) {
    %c0_i32 = arith.constant 0 : i32
    %c0_i32_0 = arith.constant 0 : i32
    return %arg0, %c0_i32 : i32, i32
  }
}

</mosaic_0001>

<llo_original>
// kernel: tpu_custom_call.1
$region0: #{tpu_custom_call.1}
  #allocation0 [shape = 'u32[]', space=smem, size = 0x4, offset = 0x4, fixed_abs, tag = 'smem constant byte address 0x4 - core index']
  #allocation1 [shape = 'u32[144,128]{1,0:T(1,128)}', space=vmem, size = 0x12000, scoped, tag = 'internal scratch']
  %s0 = inlined_call_operand.hbm [shape: f32[16,128], index: 0, kind: input, shape index: {}]
  %s1 = inlined_call_operand.vmem [shape: f32[1,128], index: 1, kind: input, shape index: {}]
  %s2 = inlined_call_operand.hbm [shape: f32[16,128], index: 2, kind: output, shape index: {}]
  %s3 = sld [smem:[#allocation0]]
  $region22: #{tpu_custom_call.1} parent=0
    _
  %s5 = ssub.s32 1, %s3
  %s6 = scalar_select 0, %s5, %s3
  $region1: #{tpu_custom_call.1} parent=0
    #allocation2 [shape = 'u8[8192]{0}', space=vmem, size = 0x2000, scoped, tag = 'input window, operand 0, single buffered']
    #allocation3 [shape = 's32[1]{0}', space=sflag, size = 0x4, scoped, tag = 'scoped memory for tpu_custom_call.1']
    #allocation4 [shape = 's32[1]{0}', space=sflag, size = 0x4, scoped, tag = 'scoped memory for tpu_custom_call.1']
    #allocation5 [shape = 'u8[8192]{0}', space=vmem, size = 0x2000, scoped, tag = 'output window, operand 0, single buffered']
    %7 = vsyncpa [#allocation3], 0
    %8 = vsyncpa [#allocation4], 0
    // Predicated region
    $region2: #{tpu_custom_call.1} parent=1 // pred_check
      _
    $region3: #{tpu_custom_call.1} parent=1 // pred_check_branch
      %10 = sbr.rel (0) target = $region5
    $region4: #{tpu_custom_call.1} parent=1 // pred_region
      %s12 = ssub.s32 256, 256
      %13 = vsyncadd [#allocation3], %s12
      %s14 = sshll.u32 [#allocation2], 4
      %s15 = int_to_ptr.vmem [resolvable:$true] %s14
      %20 = dma.hbm_to_vmem [thread:$0]  %s0, 256, %s15, [#allocation3], 128, 128, 8
    $region5: #{tpu_custom_call.1} parent=1 // pred_fallthru
      _
    // Predicated region
    $region6: #{tpu_custom_call.1} parent=1 // pred_check
      _
    $region7: #{tpu_custom_call.1} parent=1 // pred_check_branch
      %22 = sbr.rel (0) target = $region9
    $region8: #{tpu_custom_call.1} parent=1 // pred_region
      _
    $region9: #{tpu_custom_call.1} parent=1 // pred_fallthru
      _
    // Predicated region
    $region10: #{tpu_custom_call.1} parent=1 // pred_check
      _
    $region11: #{tpu_custom_call.1} parent=1 // pred_check_branch
      %24 = sbr.rel (0) target = $region13
    $region12: #{tpu_custom_call.1} parent=1 // pred_region
      %25 = dma.done [#allocation3], 256
    $region13: #{tpu_custom_call.1} parent=1 // pred_fallthru
      _
    %v26 = vld [vmem:[#allocation2] sm:$0xff]
    %v27 = vld [vmem:[#allocation2 + $0x8] sm:$0xff]
    %v28 = vld [vmem:[%s1] sm:$0x1]
    %v29 = vmul.f32 %v26, %v26
    %v30 = vmul.f32 %v27, %v27
    %31 = vadd.xlane.f32.xlu0 %v29
    %v32 = vpop.xlane.xlu0 %31
    %33 = vadd.xlane.f32.xlu0 %v30
    %v34 = vpop.xlane.xlu0 %33
    %v35 = vrcp.pop 128.0
    %v36 = vmul.f32 %v32, %v35
    %v37 = vmul.f32 %v34, %v35
    %v38 = vrsqrt.pop %v36
    %v39 = vmul.f32 %v36, %v38
    %vm40 = vcmp.eq.f32.partialorder %v36, inf
    %v41 = vsel %vm40, %v36, %v39
    %vm42 = vcmp.eq.f32.partialorder %v36, 0.0
    %v43 = vand.u32 %v36, 2147483648
    %v44 = vsel %vm42, %v43, %v41
    %v45 = vrsqrt.pop %v37
    %v46 = vmul.f32 %v37, %v45
    %vm47 = vcmp.eq.f32.partialorder %v37, inf
    %v48 = vsel %vm47, %v37, %v46
    %vm49 = vcmp.eq.f32.partialorder %v37, 0.0
    %v50 = vand.u32 %v37, 2147483648
    %v51 = vsel %vm49, %v50, %v48
    %v52 = vadd.f32 %v44, 1e-06
    %v53 = vadd.f32 %v51, 1e-06
    %v54 = vrcp.pop %v52
    %v55 = vmul.f32 1.0, %v54
    %v56 = vrcp.pop %v53
    %v57 = vmul.f32 1.0, %v56
    %v58 = vmul.f32 %v26, %v55
    %v59 = vmul.f32 %v27, %v57
    %v61 = vlaneseq
    %v62 = vshrl.u32 %v61, 7
    %v63 = vsub.s32 0, %v62
    %v64 = vrot.slane %v28, %v63
    %v66 = vmul.f32 %v58, %v64
    %v67 = vmul.f32 %v59, %v64
    %68 = vst [vmem:[#allocation5] sm:$0xff] %v66
    %69 = vst [vmem:[#allocation5 + $0x8] sm:$0xff] %v67
    // Predicated region
    $region14: #{tpu_custom_call.1} parent=1 // pred_check
      _
    $region15: #{tpu_custom_call.1} parent=1 // pred_check_branch
      %71 = sbr.rel (0) target = $region17
    $region16: #{tpu_custom_call.1} parent=1 // pred_region
      %s73 = ssub.s32 256, 256
      %74 = vsyncadd [#allocation4], %s73
      %s75 = sshll.u32 [#allocation5], 4
      %s76 = int_to_ptr.vmem [resolvable:$true] %s75
      %81 = dma.vmem_to_hbm [thread:$0]  %s76, 256, %s2, [#allocation4], 128, 128, 8
    $region17: #{tpu_custom_call.1} parent=1 // pred_fallthru
      _
    // Predicated region
    $region18: #{tpu_custom_call.1} parent=1 // pred_check
      _
    $region19: #{tpu_custom_call.1} parent=1 // pred_check_branch
      %83 = sbr.rel (0) target = $region21
    $region20: #{tpu_custom_call.1} parent=1 // pred_region
      %84 = dma.done [#allocation4], 256
    $region21: #{tpu_custom_call.1} parent=1 // pred_fallthru
      _
    %85 = vsyncpa [#allocation3], 1
    %86 = vsyncpa [#allocation4], 1

</llo_original>
